<compile_context>
chip_gen: v7x
topology: tpu7x:2x2x1
jax: 0.10.0
libtpu: 0.0.40
codegen_flags: <defaults>
</compile_context>

<pallas_src>
import functools

import jax
import jax.numpy as jnp
from jax.experimental import pallas as pl
from jax.experimental.pallas import tpu as pltpu

_LANES = 128                       # vreg lane width
_SUBLANES = 8                      # vreg sublane count
_CHUNK = _SUBLANES * _LANES        # 1024 elements = one (8, 128) f32 vreg
_DEFAULT_MAX_TILE_ROWS = 4096      # (4096, 128) f32 = 2 MiB per pipeline buffer
_VMEM_LIMIT_BYTES = 32 * 1024 * 1024


@functools.lru_cache(maxsize=None)
def _num_tensorcores():
    """Best-effort TensorCores-per-chip (2 on v7x).

    Defaults to 1, which is always correct and avoids emitting CORE_PARALLEL
    semantics on single-core chips (v5e/v6e).
    """
    try:
        info = pltpu.get_tpu_info()
    except Exception:
        return 1
    for name in ("num_cores", "num_tensorcores", "tensorcore_count",
                 "cores_per_chip", "num_cores_per_chip"):
        v = getattr(info, name, None)
        if isinstance(v, int) and not isinstance(v, bool) and 1 <= v <= 8:
            return v
    return 1


def _pick_slice_rows(tile_rows):
    """Rows per inner-loop slice: small enough to live in vregs, >=8."""
    for s in (64, 32, 16, 8):
        if tile_rows % s == 0:
            return s
    return tile_rows  # unreachable: tile_rows is always a multiple of 8


def _make_dice_kernel(tile_rows, slice_rows, steps_per_shard, rows,
                      n_full_blocks, needs_mask):
    """Partial-sum kernel with a mask-free fast path for interior blocks."""
    n_slices = tile_rows // slice_rows
    unroll = 4 if n_slices % 4 == 0 else 1

    def kernel(p_ref, t_ref, inter_ref, sp_ref, st_ref):
        i = pl.program_id(1)   # reduction step within this shard

        @pl.when(i == 0)
        def _():
            inter_ref[...] = jnp.zeros_like(inter_ref)
            sp_ref[...] = jnp.zeros_like(sp_ref)
            st_ref[...] = jnp.zeros_like(st_ref)

        def accumulate(row_limit):
            # row_limit is None (fast path) or a scalar int32 giving the
            # number of valid rows in this block (<=0 for dead overrun steps).
            if row_limit is not None:
                row_iota = jax.lax.broadcasted_iota(
                    jnp.int32, (slice_rows, _LANES), 0)

            def body(j, carry):
                acc_i, acc_p, acc_t = carry
                off = pl.multiple_of(j * slice_rows, slice_rows)
                p = p_ref[pl.ds(off, slice_rows), :].astype(jnp.float32)
                t = t_ref[pl.ds(off, slice_rows), :].astype(jnp.float32)
                # sigmoid(x) == 0.5*tanh(0.5*x) + 0.5 : one EUP push per vreg.
                p = 0.5 * jnp.tanh(0.5 * p) + 0.5
                if row_limit is not None:
                    mask = row_iota < (row_limit - off)
                    p = jnp.where(mask, p, 0.0)
                    t = jnp.where(mask, t, 0.0)
                acc_i = acc_i + (p * t).reshape(-1, _SUBLANES, _LANES).sum(0)
                acc_p = acc_p + p.reshape(-1, _SUBLANES, _LANES).sum(0)
                acc_t = acc_t + t.reshape(-1, _SUBLANES, _LANES).sum(0)
                return acc_i, acc_p, acc_t

            zero = jnp.zeros((_SUBLANES, _LANES), jnp.float32)
            acc_i, acc_p, acc_t = jax.lax.fori_loop(
                0, n_slices, body, (zero, zero, zero), unroll=unroll)
            inter_ref[...] += acc_i
            sp_ref[...] += acc_p
            st_ref[...] += acc_t

        if needs_mask:
            block_id = pl.program_id(0) * steps_per_shard + i

            @pl.when(block_id < n_full_blocks)
            def _():
                accumulate(None)                      # interior: no mask work

            @pl.when(block_id >= n_full_blocks)
            def _():
                accumulate(rows - block_id * tile_rows)
        else:
            accumulate(None)

    return kernel


def _kernel_partial_sums(p2, t2, rows, max_tile_rows):
    """Returns (sum p*t, sum p, sum t) over the (rows, 128) slabs p2 / t2."""
    tile_rows = min(max_tile_rows, rows)          # multiple of 8, or full dim
    n_blocks = pl.cdiv(rows, tile_rows)
    n_full_blocks = rows // tile_rows

    num_shards = _num_tensorcores()
    if n_blocks < num_shards:
        num_shards = 1
    steps = pl.cdiv(n_blocks, num_shards)
    needs_mask = (num_shards * steps) > n_full_blocks

    slice_rows = _pick_slice_rows(tile_rows)

    def in_index_map(c, i):
        # Clamp so an overrun step (odd block count under core sharding)
        # re-reads a valid block; its contribution is zeroed by the mask.
        return (jnp.minimum(c * steps + i, n_blocks - 1), 0)

    in_spec = pl.BlockSpec((tile_rows, _LANES), in_index_map)
    out_spec = pl.BlockSpec((None, _SUBLANES, _LANES), lambda c, i: (c, 0, 0))
    acc_shape = jax.ShapeDtypeStruct(
        (num_shards, _SUBLANES, _LANES), jnp.float32)

    kernel = _make_dice_kernel(tile_rows, slice_rows, steps, rows,
                               n_full_blocks, needs_mask)

    if num_shards > 1:
        # TODO(synk): verify in xprof that CORE_PARALLEL activates both
        # TensorCores on v7x for this bandwidth-bound reduction.
        lead_sem = getattr(pltpu, "CORE_PARALLEL", "parallel")
    else:
        lead_sem = "arbitrary"

    total = rows * _LANES
    bytes_in = p2.size * p2.dtype.itemsize + t2.size * t2.dtype.itemsize
    cost = pl.CostEstimate(
        flops=6 * total,
        transcendentals=total,
        bytes_accessed=bytes_in + 3 * num_shards * _CHUNK * 4,
    )

    inter, sp, st = pl.pallas_call(
        kernel,
        out_shape=(acc_shape, acc_shape, acc_shape),
        grid_spec=pltpu.PrefetchScalarGridSpec(
            num_scalar_prefetch=0,
            grid=(num_shards, steps),
            in_specs=[in_spec, in_spec],
            out_specs=[out_spec, out_spec, out_spec],
        ),
        compiler_params=pltpu.CompilerParams(
            dimension_semantics=(lead_sem, "arbitrary"),
            vmem_limit_bytes=_VMEM_LIMIT_BYTES),
        cost_estimate=cost,
    )(p2, t2)

    return jnp.sum(inter), jnp.sum(sp), jnp.sum(st)


def dice_loss(preds, targets, smooth=1e-5, *,
              max_tile_rows=_DEFAULT_MAX_TILE_ROWS):
    """1 - (2*sum(sigmoid(p)*t) + smooth) / (sum(sigmoid(p)) + sum(t) + smooth)."""
    assert preds.shape == targets.shape
    total = preds.size

    p_flat = preds.reshape(-1)
    t_flat = targets.reshape(-1)
    main = (total // _CHUNK) * _CHUNK        # 1024-aligned prefix for the kernel

    intersection = jnp.float32(0.0)
    sum_p = jnp.float32(0.0)
    sum_t = jnp.float32(0.0)

    if main > 0:
        rows = main // _LANES                # always a multiple of 8
        if main == total:
            p2 = p_flat.reshape(rows, _LANES)
            t2 = t_flat.reshape(rows, _LANES)
        else:
            p2 = p_flat[:main].reshape(rows, _LANES)
            t2 = t_flat[:main].reshape(rows, _LANES)
        inter_k, sp_k, st_k = _kernel_partial_sums(p2, t2, rows, max_tile_rows)
        intersection = intersection + inter_k
        sum_p = sum_p + sp_k
        sum_t = sum_t + st_k

    if main != total:
        # <= 1023 trailing elements: cheaper to reduce in glue JAX than to pad
        # both full tensors and stream an extra masked block through the kernel.
        p_tail = jax.nn.sigmoid(p_flat[main:].astype(jnp.float32))
        t_tail = t_flat[main:].astype(jnp.float32)
        intersection = intersection + jnp.sum(p_tail * t_tail)
        sum_p = sum_p + jnp.sum(p_tail)
        sum_t = sum_t + jnp.sum(t_tail)

    dice = (2.0 * intersection + smooth) / (sum_p + sum_t + smooth)
    return 1.0 - dice


def _dice_loss_ref(preds, targets, smooth=1e-5):
    p = jax.nn.sigmoid(preds.astype(jnp.float32))
    t = targets.astype(jnp.float32)
    intersection = jnp.sum(p * t)
    union = jnp.sum(p) + jnp.sum(t)
    return 1.0 - (2.0 * intersection + smooth) / (union + smooth)


if __name__ == "__main__":
    key = jax.random.PRNGKey(0)
    k_pred, k_tgt = jax.random.split(key)

    # Typical DiceLoss usage: logits + binary mask, NCHW.
    preds = jax.random.normal(k_pred, (2, 4, 16, 16), dtype=jnp.float32)
    targets = (jax.random.uniform(k_tgt, (2, 4, 16, 16)) > 0.5).astype(
        jnp.float32)
    loss = dice_loss(preds, targets)
    jax.block_until_ready(loss)
    ref = _dice_loss_ref(preds, targets)
    assert jnp.allclose(loss, ref, rtol=1e-5, atol=2e-6), (loss, ref)

    # Ragged element count + bf16 inputs: exercises the glue-JAX tail path
    # (no full-array pad copy) and mixed-precision accumulation.
    k2p, k2t = jax.random.split(jax.random.PRNGKey(1))
    preds2 = jax.random.normal(k2p, (3, 5, 7, 11), dtype=jnp.bfloat16)
    targets2 = (jax.random.uniform(k2t, (3, 5, 7, 11)) > 0.5).astype(
        jnp.bfloat16)
    loss2 = dice_loss(preds2, targets2)
    jax.block_until_ready(loss2)
    ref2 = _dice_loss_ref(preds2, targets2)
    assert jnp.allclose(loss2, ref2, rtol=1e-4, atol=1e-5), (loss2, ref2)

    # Small tile override: forces a partial last block so the pl.when-gated
    # masked path (row-limit compare) is exercised at small size.
    k3p, k3t = jax.random.split(jax.random.PRNGKey(2))
    preds3 = jax.random.normal(k3p, (3, 1024), dtype=jnp.float32)
    targets3 = (jax.random.uniform(k3t, (3, 1024)) > 0.5).astype(jnp.float32)
    loss3 = dice_loss(preds3, targets3, max_tile_rows=16)
    jax.block_until_ready(loss3)
    ref3 = _dice_loss_ref(preds3, targets3)
    assert jnp.allclose(loss3, ref3, rtol=1e-5, atol=2e-6), (loss3, ref3)

    print("KERNEL_OK")
</pallas_src>

<mosaic_0001>
module attributes {stable_mosaic.version = 11 : i64} {
  func.func @kernel(%arg0: i32, %arg1: i32, %arg2: memref<16x128xf32, #tpu.memory_space<vmem>>, %arg3: memref<16x128xf32, #tpu.memory_space<vmem>>, %arg4: memref<1x8x128xf32, #tpu.memory_space<vmem>>, %arg5: memref<1x8x128xf32, #tpu.memory_space<vmem>>, %arg6: memref<1x8x128xf32, #tpu.memory_space<vmem>>) attributes {dimension_semantics = [#tpu.dimension_semantics<arbitrary>, #tpu.dimension_semantics<arbitrary>], iteration_bounds = array<i64: 1, 1>, scalar_prefetch = 0 : i64, scratch_operands = 0 : i64, tpu.core_type = #tpu.core_type<tc>, window_params = [{transform_indices = @transform_0, window_bounds = array<i64: 16, 128>}, {transform_indices = @transform_1, window_bounds = array<i64: 16, 128>}, {transform_indices = @transform_2, window_bounds = array<i64: 1, 8, 128>}, {transform_indices = @transform_3, window_bounds = array<i64: 1, 8, 128>}, {transform_indices = @transform_4, window_bounds = array<i64: 1, 8, 128>}]} {
    %c0_i32 = arith.constant 0 : i32
    %0 = arith.cmpi eq, %arg1, %c0_i32 : i32
    %1 = arith.extui %0 : i1 to i32
    %c0_i32_0 = arith.constant 0 : i32
    %2 = arith.cmpi ne, %1, %c0_i32_0 : i32
    scf.if %2 {
      %cst_27 = arith.constant 0.000000e+00 : f32
      %45 = vector.broadcast %cst_27 : f32 to vector<8x128xf32>
      %c0_28 = arith.constant 0 : index
      %c0_29 = arith.constant 0 : index
      %c0_30 = arith.constant 0 : index
      %46 = vector.load %arg4[%c0_28, %c0_29, %c0_30] : memref<1x8x128xf32, #tpu.memory_space<vmem>>, vector<1x8x128xf32>
      %47 = vector.shape_cast %46 : vector<1x8x128xf32> to vector<8x128xf32>
      %48 = vector.shape_cast %45 : vector<8x128xf32> to vector<1x8x128xf32>
      tpu.vector_store %arg4[%c0_28, %c0_29, %c0_30], %48 {strides = array<i32>} : memref<1x8x128xf32, #tpu.memory_space<vmem>>, vector<1x8x128xf32>,
      %cst_31 = arith.constant 0.000000e+00 : f32
      %49 = vector.broadcast %cst_31 : f32 to vector<8x128xf32>
      %c0_32 = arith.constant 0 : index
      %c0_33 = arith.constant 0 : index
      %c0_34 = arith.constant 0 : index
      %50 = vector.load %arg5[%c0_32, %c0_33, %c0_34] : memref<1x8x128xf32, #tpu.memory_space<vmem>>, vector<1x8x128xf32>
      %51 = vector.shape_cast %50 : vector<1x8x128xf32> to vector<8x128xf32>
      %52 = vector.shape_cast %49 : vector<8x128xf32> to vector<1x8x128xf32>
      tpu.vector_store %arg5[%c0_32, %c0_33, %c0_34], %52 {strides = array<i32>} : memref<1x8x128xf32, #tpu.memory_space<vmem>>, vector<1x8x128xf32>,
      %cst_35 = arith.constant 0.000000e+00 : f32
      %53 = vector.broadcast %cst_35 : f32 to vector<8x128xf32>
      %c0_36 = arith.constant 0 : index
      %c0_37 = arith.constant 0 : index
      %c0_38 = arith.constant 0 : index
      %54 = vector.load %arg6[%c0_36, %c0_37, %c0_38] : memref<1x8x128xf32, #tpu.memory_space<vmem>>, vector<1x8x128xf32>
      %55 = vector.shape_cast %54 : vector<1x8x128xf32> to vector<8x128xf32>
      %56 = vector.shape_cast %53 : vector<8x128xf32> to vector<1x8x128xf32>
      tpu.vector_store %arg6[%c0_36, %c0_37, %c0_38], %56 {strides = array<i32>} : memref<1x8x128xf32, #tpu.memory_space<vmem>>, vector<1x8x128xf32>,
    } else {
    }
    %cst = arith.constant 0.000000e+00 : f32
    %3 = vector.broadcast %cst : f32 to vector<8x128xf32>
    %c0_i32_1 = arith.constant 0 : i32
    %c16_i32 = arith.constant 16 : i32
    %4 = arith.muli %c0_i32_1, %c16_i32 : i32
    %5 = tpu.assume_multiple %4, 16 : i32
    %6 = arith.index_cast %5 : i32 to index
    %c0 = arith.constant 0 : index
    %7 = vector.load %arg2[%6, %c0] : memref<16x128xf32, #tpu.memory_space<vmem>>, vector<16x128xf32>
    %8 = arith.index_cast %5 : i32 to index
    %c0_2 = arith.constant 0 : index
    %9 = vector.load %arg3[%8, %c0_2] : memref<16x128xf32, #tpu.memory_space<vmem>>, vector<16x128xf32>
    %cst_3 = arith.constant 5.000000e-01 : f32
    %10 = vector.broadcast %cst_3 : f32 to vector<16x128xf32>
    %11 = arith.mulf %10, %7 : vector<16x128xf32>
    %12 = math.tanh %11 : vector<16x128xf32>
    %cst_4 = arith.constant 5.000000e-01 : f32
    %13 = vector.broadcast %cst_4 : f32 to vector<16x128xf32>
    %14 = arith.mulf %13, %12 : vector<16x128xf32>
    %cst_5 = arith.constant 5.000000e-01 : f32
    %15 = vector.broadcast %cst_5 : f32 to vector<16x128xf32>
    %16 = arith.addf %14, %15 : vector<16x128xf32>
    %17 = arith.mulf %16, %9 : vector<16x128xf32>
    %18 = vector.shape_cast %17 : vector<16x128xf32> to vector<2x8x128xf32>
    %cst_6 = arith.constant dense<0.000000e+00> : vector<8x128xf32>
    %19 = vector.multi_reduction <add>, %18, %cst_6 [0] : vector<2x8x128xf32> to vector<8x128xf32>
    %20 = arith.addf %3, %19 : vector<8x128xf32>
    %21 = vector.shape_cast %16 : vector<16x128xf32> to vector<2x8x128xf32>
    %cst_7 = arith.constant dense<0.000000e+00> : vector<8x128xf32>
    %22 = vector.multi_reduction <add>, %21, %cst_7 [0] : vector<2x8x128xf32> to vector<8x128xf32>
    %23 = arith.addf %3, %22 : vector<8x128xf32>
    %24 = vector.shape_cast %9 : vector<16x128xf32> to vector<2x8x128xf32>
    %cst_8 = arith.constant dense<0.000000e+00> : vector<8x128xf32>
    %25 = vector.multi_reduction <add>, %24, %cst_8 [0] : vector<2x8x128xf32> to vector<8x128xf32>
    %26 = arith.addf %3, %25 : vector<8x128xf32>
    %c1_i32 = arith.constant 1 : i32
    %c0_9 = arith.constant 0 : index
    %c0_10 = arith.constant 0 : index
    %c0_11 = arith.constant 0 : index
    %27 = vector.load %arg4[%c0_9, %c0_10, %c0_11] : memref<1x8x128xf32, #tpu.memory_space<vmem>>, vector<1x8x128xf32>
    %28 = vector.shape_cast %27 : vector<1x8x128xf32> to vector<8x128xf32>
    %29 = arith.addf %28, %20 : vector<8x128xf32>
    %c0_12 = arith.constant 0 : index
    %c0_13 = arith.constant 0 : index
    %c0_14 = arith.constant 0 : index
    %30 = vector.load %arg4[%c0_12, %c0_13, %c0_14] : memref<1x8x128xf32, #tpu.memory_space<vmem>>, vector<1x8x128xf32>
    %31 = vector.shape_cast %30 : vector<1x8x128xf32> to vector<8x128xf32>
    %32 = vector.shape_cast %29 : vector<8x128xf32> to vector<1x8x128xf32>
    tpu.vector_store %arg4[%c0_12, %c0_13, %c0_14], %32 {strides = array<i32>} : memref<1x8x128xf32, #tpu.memory_space<vmem>>, vector<1x8x128xf32>,
    %c0_15 = arith.constant 0 : index
    %c0_16 = arith.constant 0 : index
    %c0_17 = arith.constant 0 : index
    %33 = vector.load %arg5[%c0_15, %c0_16, %c0_17] : memref<1x8x128xf32, #tpu.memory_space<vmem>>, vector<1x8x128xf32>
    %34 = vector.shape_cast %33 : vector<1x8x128xf32> to vector<8x128xf32>
    %35 = arith.addf %34, %23 : vector<8x128xf32>
    %c0_18 = arith.constant 0 : index
    %c0_19 = arith.constant 0 : index
    %c0_20 = arith.constant 0 : index
    %36 = vector.load %arg5[%c0_18, %c0_19, %c0_20] : memref<1x8x128xf32, #tpu.memory_space<vmem>>, vector<1x8x128xf32>
    %37 = vector.shape_cast %36 : vector<1x8x128xf32> to vector<8x128xf32>
    %38 = vector.shape_cast %35 : vector<8x128xf32> to vector<1x8x128xf32>
    tpu.vector_store %arg5[%c0_18, %c0_19, %c0_20], %38 {strides = array<i32>} : memref<1x8x128xf32, #tpu.memory_space<vmem>>, vector<1x8x128xf32>,
    %c0_21 = arith.constant 0 : index
    %c0_22 = arith.constant 0 : index
    %c0_23 = arith.constant 0 : index
    %39 = vector.load %arg6[%c0_21, %c0_22, %c0_23] : memref<1x8x128xf32, #tpu.memory_space<vmem>>, vector<1x8x128xf32>
    %40 = vector.shape_cast %39 : vector<1x8x128xf32> to vector<8x128xf32>
    %41 = arith.addf %40, %26 : vector<8x128xf32>
    %c0_24 = arith.constant 0 : index
    %c0_25 = arith.constant 0 : index
    %c0_26 = arith.constant 0 : index
    %42 = vector.load %arg6[%c0_24, %c0_25, %c0_26] : memref<1x8x128xf32, #tpu.memory_space<vmem>>, vector<1x8x128xf32>
    %43 = vector.shape_cast %42 : vector<1x8x128xf32> to vector<8x128xf32>
    %44 = vector.shape_cast %41 : vector<8x128xf32> to vector<1x8x128xf32>
    tpu.vector_store %arg6[%c0_24, %c0_25, %c0_26], %44 {strides = array<i32>} : memref<1x8x128xf32, #tpu.memory_space<vmem>>, vector<1x8x128xf32>,
    return
  }
  func.func @transform_0(%arg0: i32, %arg1: i32) -> (i32, i32) {
    %c1_i32 = arith.constant 1 : i32
    %0 = arith.muli %arg0, %c1_i32 : i32
    %1 = arith.addi %0, %arg1 : i32
    %c0_i32 = arith.constant 0 : i32
    %2 = arith.minsi %1, %c0_i32 : i32
    %c0_i32_0 = arith.constant 0 : i32
    %c0_i32_1 = arith.constant 0 : i32
    return %2, %c0_i32_0 : i32, i32
  }
  func.func @transform_1(%arg0: i32, %arg1: i32) -> (i32, i32) {
    %c1_i32 = arith.constant 1 : i32
    %0 = arith.muli %arg0, %c1_i32 : i32
    %1 = arith.addi %0, %arg1 : i32
    %c0_i32 = arith.constant 0 : i32
    %2 = arith.minsi %1, %c0_i32 : i32
    %c0_i32_0 = arith.constant 0 : i32
    %c0_i32_1 = arith.constant 0 : i32
    return %2, %c0_i32_0 : i32, i32
  }
  func.func @transform_2(%arg0: i32, %arg1: i32) -> (i32, i32, i32) {
    %c0_i32 = arith.constant 0 : i32
    %c0_i32_0 = arith.constant 0 : i32
    %c0_i32_1 = arith.constant 0 : i32
    return %arg0, %c0_i32, %c0_i32_0 : i32, i32, i32
  }
  func.func @transform_3(%arg0: i32, %arg1: i32) -> (i32, i32, i32) {
    %c0_i32 = arith.constant 0 : i32
    %c0_i32_0 = arith.constant 0 : i32
    %c0_i32_1 = arith.constant 0 : i32
    return %arg0, %c0_i32, %c0_i32_0 : i32, i32, i32
  }
  func.func @transform_4(%arg0: i32, %arg1: i32) -> (i32, i32, i32) {
    %c0_i32 = arith.constant 0 : i32
    %c0_i32_0 = arith.constant 0 : i32
    %c0_i32_1 = arith.constant 0 : i32
    return %arg0, %c0_i32, %c0_i32_0 : i32, i32, i32
  }
}

</mosaic_0001>

<llo_original>
// kernel: tpu_custom_call.1
$region0: #{tpu_custom_call.1}
  #allocation0 [shape = 'u32[]', space=smem, size = 0x4, offset = 0x4, fixed_abs, tag = 'smem constant byte address 0x4 - core index']
  #allocation1 [shape = 'u32[144,128]{1,0:T(1,128)}', space=vmem, size = 0x12000, scoped, tag = 'internal scratch']
  %s0 = inlined_call_operand.hbm [shape: f32[16,128], index: 0, kind: input, shape index: {}]
  %s1 = inlined_call_operand.hbm [shape: f32[16,128], index: 1, kind: input, shape index: {}]
  %s2 = inlined_call_operand.hbm [shape: f32[1,8,128], index: 2, kind: output, shape index: {0}]
  %s3 = inlined_call_operand.hbm [shape: f32[1,8,128], index: 3, kind: output, shape index: {1}]
  %s4 = inlined_call_operand.hbm [shape: f32[1,8,128], index: 4, kind: output, shape index: {2}]
  %5 = xla_tuple %s2, %s3, %s4
  %s6 = sld [smem:[#allocation0]]
  $region46: #{tpu_custom_call.1} parent=0
    _
  %s8 = ssub.s32 1, %s6
  %s9 = scalar_select 0, %s8, %s6
  $region1: #{tpu_custom_call.1} parent=0
    #allocation2 [shape = 'u8[8192]{0}', space=vmem, size = 0x2000, scoped, tag = 'input window, operand 0, single buffered']
    #allocation3 [shape = 's32[1]{0}', space=sflag, size = 0x4, scoped, tag = 'scoped memory for tpu_custom_call.1']
    #allocation4 [shape = 's32[1]{0}', space=sflag, size = 0x4, scoped, tag = 'scoped memory for tpu_custom_call.1']
    #allocation5 [shape = 'u8[8192]{0}', space=vmem, size = 0x2000, scoped, tag = 'input window, operand 1, single buffered']
    #allocation6 [shape = 's32[1]{0}', space=sflag, size = 0x4, scoped, tag = 'scoped memory for tpu_custom_call.1']
    #allocation7 [shape = 'u8[4096]{0}', space=vmem, size = 0x1000, scoped, tag = 'output window, operand 0, single buffered']
    #allocation8 [shape = 'u8[4096]{0}', space=vmem, size = 0x1000, scoped, tag = 'output window, operand 1, single buffered']
    #allocation9 [shape = 's32[1]{0}', space=sflag, size = 0x4, scoped, tag = 'scoped memory for tpu_custom_call.1']
    #allocation10 [shape = 'u8[4096]{0}', space=vmem, size = 0x1000, scoped, tag = 'output window, operand 2, single buffered']
    %10 = vsyncpa [#allocation3], 0
    %11 = vsyncpa [#allocation6], 0
    %12 = vsyncpa [#allocation4], 0
    %13 = vsyncpa [#allocation9], 0
    // Predicated region
    $region2: #{tpu_custom_call.1} parent=1 // pred_check
      _
    $region3: #{tpu_custom_call.1} parent=1 // pred_check_branch
      %15 = sbr.rel (0) target = $region5
    $region4: #{tpu_custom_call.1} parent=1 // pred_region
      %s16 = sadd.s32 0, 0
      %p17 = scmp.lt.s32.totalorder %s16, 0
      %s18 = scalar_select %p17, %s16, 0
      %s19 = smul.u32 2, %s18
      %s21 = ssub.s32 256, 256
      %22 = vsyncadd [#allocation3], %s21
      %s23 = smul.addr %s19, 128
      %s24 = scalar_lea.hbm %s0, %s23
      %s25 = sshll.u32 [#allocation2], 4
      %s26 = int_to_ptr.vmem [resolvable:$true] %s25
      %31 = dma.hbm_to_vmem [thread:$0]  %s24, 256, %s26, [#allocation3], 128, 128, 8
    $region5: #{tpu_custom_call.1} parent=1 // pred_fallthru
      _
    // Predicated region
    $region6: #{tpu_custom_call.1} parent=1 // pred_check
      _
    $region7: #{tpu_custom_call.1} parent=1 // pred_check_branch
      %33 = sbr.rel (0) target = $region9
    $region8: #{tpu_custom_call.1} parent=1 // pred_region
      %s34 = sadd.s32 0, 0
      %p35 = scmp.lt.s32.totalorder %s34, 0
      %s36 = scalar_select %p35, %s34, 0
      %s37 = smul.u32 2, %s36
      %s39 = ssub.s32 256, 256
      %40 = vsyncadd [#allocation6], %s39
      %s41 = smul.addr %s37, 128
      %s42 = scalar_lea.hbm %s1, %s41
      %s43 = sshll.u32 [#allocation5], 4
      %s44 = int_to_ptr.vmem [resolvable:$true] %s43
      %49 = dma.hbm_to_vmem [thread:$0]  %s42, 256, %s44, [#allocation6], 128, 128, 8
    $region9: #{tpu_custom_call.1} parent=1 // pred_fallthru
      _
    // Predicated region
    $region10: #{tpu_custom_call.1} parent=1 // pred_check
      _
    $region11: #{tpu_custom_call.1} parent=1 // pred_check_branch
      %51 = sbr.rel (0) target = $region13
    $region12: #{tpu_custom_call.1} parent=1 // pred_region
      %52 = dma.done [#allocation3], 256
    $region13: #{tpu_custom_call.1} parent=1 // pred_fallthru
      _
    // Predicated region
    $region14: #{tpu_custom_call.1} parent=1 // pred_check
      _
    $region15: #{tpu_custom_call.1} parent=1 // pred_check_branch
      %54 = sbr.rel (0) target = $region17
    $region16: #{tpu_custom_call.1} parent=1 // pred_region
      %55 = dma.done [#allocation6], 256
    $region17: #{tpu_custom_call.1} parent=1 // pred_fallthru
      _
    %s56 = sadd.s32 0, 0
    %p57 = scmp.lt.s32.totalorder %s56, 0
    %s58 = scalar_select %p57, %s56, 0
    %s59 = smul.u32 2, %s58
    %s60 = sadd.s32 0, 0
    %p61 = scmp.lt.s32.totalorder %s60, 0
    %s62 = scalar_select %p61, %s60, 0
    %s63 = smul.u32 2, %s62
    %p64 = scmp.eq.s32.totalorder 0, 0
    // Predicated region
    $region18: #{tpu_custom_call.1} parent=1 // pred_check
      %p65 = pneg %p64
    $region19: #{tpu_custom_call.1} parent=1 // pred_check_branch
      %67 = sbr.rel (%p65) target = $region21
    $region20: #{tpu_custom_call.1} parent=1 // pred_region
      %68 = vst [vmem:[#allocation7] sm:$0xff] 0.0
      %69 = vst [vmem:[#allocation8] sm:$0xff] 0.0
      %70 = vst [vmem:[#allocation10] sm:$0xff] 0.0
    $region21: #{tpu_custom_call.1} parent=1 // pred_fallthru
      _
    %v71 = vld [vmem:[#allocation2] sm:$0xff]
    %v72 = vld [vmem:[#allocation2 + $0x8] sm:$0xff]
    %v73 = vld [vmem:[#allocation5] sm:$0xff]
    %v74 = vld [vmem:[#allocation5 + $0x8] sm:$0xff]
    %v75 = vmul.f32 %v71, 0.5
    %v76 = vmul.f32 %v72, 0.5
    %v77 = vtanh.pop %v75
    %v78 = vtanh.pop %v76
    %v79 = vmul.f32 %v77, 0.5
    %v80 = vmul.f32 %v78, 0.5
    %v81 = vadd.f32 %v79, 0.5
    %v82 = vadd.f32 %v80, 0.5
    %v83 = vmul.f32 %v81, %v73
    %v84 = vmul.f32 %v82, %v74
    %v85 = vadd.f32 %v83, %v84
    %v86 = vadd.f32 %v85, 0.0
    %v87 = vadd.f32 %v81, %v82
    %v88 = vadd.f32 %v87, 0.0
    %v89 = vadd.f32 %v73, %v74
    %v90 = vadd.f32 %v89, 0.0
    %v91 = vld [vmem:[#allocation7] sm:$0xff]
    %v92 = vadd.f32 %v91, %v86
    %93 = vst [vmem:[#allocation7] sm:$0xff] %v92
    %v94 = vld [vmem:[#allocation8] sm:$0xff]
    %v95 = vadd.f32 %v94, %v88
    %96 = vst [vmem:[#allocation8] sm:$0xff] %v95
    %v97 = vld [vmem:[#allocation10] sm:$0xff]
    %v98 = vadd.f32 %v97, %v90
    %99 = vst [vmem:[#allocation10] sm:$0xff] %v98
    // Predicated region
    $region22: #{tpu_custom_call.1} parent=1 // pred_check
      _
    $region23: #{tpu_custom_call.1} parent=1 // pred_check_branch
      %101 = sbr.rel (0) target = $region25
    $region24: #{tpu_custom_call.1} parent=1 // pred_region
      %s103 = ssub.s32 128, 128
      %104 = vsyncadd [#allocation4], %s103
      %s106 = sshll.u32 [#allocation7], 4
      %s107 = int_to_ptr.vmem [resolvable:$true] %s106
      %109 = dma.vmem_to_hbm [thread:$0]  %s107, 128, %s2, [#allocation4]
    $region25: #{tpu_custom_call.1} parent=1 // pred_fallthru
      _
    // Predicated region
    $region26: #{tpu_custom_call.1} parent=1 // pred_check
      _
    $region27: #{tpu_custom_call.1} parent=1 // pred_check_branch
      %111 = sbr.rel (0) target = $region29
    $region28: #{tpu_custom_call.1} parent=1 // pred_region
      %s113 = ssub.s32 128, 128
      %114 = vsyncadd [#allocation9], %s113
      %s116 = sshll.u32 [#allocation8], 4
      %s117 = int_to_ptr.vmem [resolvable:$true] %s116
      %119 = dma.vmem_to_hbm [thread:$0]  %s117, 128, %s3, [#allocation9]
    $region29: #{tpu_custom_call.1} parent=1 // pred_fallthru
      _
    // Predicated region
    $region30: #{tpu_custom_call.1} parent=1 // pred_check
      _
    $region31: #{tpu_custom_call.1} parent=1 // pred_check_branch
      %121 = sbr.rel (0) target = $region33
    $region32: #{tpu_custom_call.1} parent=1 // pred_region
      %s123 = ssub.s32 128, 128
      %124 = vsyncadd [#allocation9], %s123
      %s126 = sshll.u32 [#allocation10], 4
      %s127 = int_to_ptr.vmem [resolvable:$true] %s126
      %129 = dma.vmem_to_hbm [thread:$0]  %s127, 128, %s4, [#allocation9]
    $region33: #{tpu_custom_call.1} parent=1 // pred_fallthru
      _
    // Predicated region
    $region34: #{tpu_custom_call.1} parent=1 // pred_check
      _
    $region35: #{tpu_custom_call.1} parent=1 // pred_check_branch
      %131 = sbr.rel (0) target = $region37
    $region36: #{tpu_custom_call.1} parent=1 // pred_region
      %132 = dma.done [#allocation4], 128
    $region37: #{tpu_custom_call.1} parent=1 // pred_fallthru
      _
    // Predicated region
    $region38: #{tpu_custom_call.1} parent=1 // pred_check
      _
    $region39: #{tpu_custom_call.1} parent=1 // pred_check_branch
      %134 = sbr.rel (0) target = $region41
    $region40: #{tpu_custom_call.1} parent=1 // pred_region
      %135 = dma.done [#allocation9], 128
    $region41: #{tpu_custom_call.1} parent=1 // pred_fallthru
      _
    // Predicated region
    $region42: #{tpu_custom_call.1} parent=1 // pred_check
      _
    $region43: #{tpu_custom_call.1} parent=1 // pred_check_branch
      %137 = sbr.rel (0) target = $region45
    $region44: #{tpu_custom_call.1} parent=1 // pred_region
      %138 = dma.done [#allocation9], 128
    $region45: #{tpu_custom_call.1} parent=1 // pred_fallthru
      _
    %139 = vsyncpa [#allocation3], 1
    %140 = vsyncpa [#allocation6], 1
    %141 = vsyncpa [#allocation4], 1
    %142 = vsyncpa [#allocation9], 1

</llo_original>
